<compile_context>
chip_gen: v7x
topology: tpu7x:2x2x1
jax: 0.10.0
libtpu: 0.0.40
codegen_flags: <defaults>
</compile_context>

<pallas_src>
import jax
import jax.numpy as jnp
from jax.experimental import pallas as pl
from jax.experimental.pallas import tpu as pltpu

_LANE = 128
_SUBLANE = {4: 8, 2: 16, 1: 32}          # itemsize -> sublane multiple
_TILE_BYTES = 4 * 1024 * 1024            # ~4 MiB per streaming x/out tile
_VMEM_LIMIT = 48 * 1024 * 1024           # fits v7x (64 MiB) and v5e/v6e (128 MiB)


def _sublane(dtype) -> int:
    return _SUBLANE.get(jnp.dtype(dtype).itemsize, 8)


def _round_up(n: int, m: int) -> int:
    return ((n + m - 1) // m) * m


def _round_down(n: int, m: int) -> int:
    return (n // m) * m


def _add_wide_kernel(x_ref, e_ref, o_ref):
    # x/o: (tb, ts, D) tile; e: (ts, D) table rows broadcast over the batch dim.
    o_ref[...] = x_ref[...] + e_ref[...][None, :, :]


def _add_flat_kernel(x_ref, e_ref, o_ref):
    # x/o: (tb, tc) flattened [seq*d] rows; e: (1, tc) broadcast over batch rows.
    o_ref[...] = x_ref[...] + e_ref[...]


def _pe_wide(x, emb_table, donate_x):
    """D % 128 == 0: keep [B, S, D]; tile seq with a cdiv grid, fold batch rows
    into the block when they fit the tile budget."""
    B, S, D = x.shape
    itemsize = x.dtype.itemsize
    sub = _sublane(x.dtype)

    # Sequence tile: sublane-aligned, sized toward the streaming budget.
    budget_rows = _round_up(max(1, _TILE_BYTES // (D * itemsize)), sub)
    ts = max(sub, min(_round_up(S, sub), budget_rows))
    # Fold (part of) the batch into the block while staying inside the budget.
    tb = max(1, min(B, _TILE_BYTES // max(1, ts * D * itemsize)))

    grid = (pl.cdiv(S, ts), pl.cdiv(B, tb))  # emb block constant along inner batch axis
    xo_spec = pl.BlockSpec((tb, ts, D), lambda s, b: (b, s, 0))
    cost = pl.CostEstimate(
        flops=B * S * D,
        transcendentals=0,
        bytes_accessed=(2 * B * S * D + S * D) * itemsize,
    )
    return pl.pallas_call(
        _add_wide_kernel,
        out_shape=jax.ShapeDtypeStruct((B, S, D), x.dtype),
        grid_spec=pltpu.PrefetchScalarGridSpec(
            num_scalar_prefetch=0,
            grid=grid,
            in_specs=[
                xo_spec,
                pl.BlockSpec((ts, D), lambda s, b: (s, 0)),  # rows from FULL table
            ],
            out_specs=xo_spec,
        ),
        compiler_params=pltpu.CompilerParams(
            dimension_semantics=("parallel", "parallel"),
            vmem_limit_bytes=_VMEM_LIMIT,
        ),
        cost_estimate=cost,
        input_output_aliases={0: 0} if donate_x else {},
    )(x, emb_table)


def _pe_flat(x, emb_table, donate_x):
    """Narrow d_model (D % 128 != 0): flatten [S, D] rows so the output is
    lane-dense; fill sublanes with batch rows; emb gets a 2-D (1, P*D) view."""
    B, S, D = x.shape
    P = emb_table.shape[0]
    SD = S * D
    PD = P * D
    itemsize = x.dtype.itemsize
    sub = _sublane(x.dtype)

    # Batch tile: fill sublanes (full vreg-width stores), capped at B.
    tb = min(B, sub)
    # Column tile: lane-aligned, sized so tb * tc ~ _TILE_BYTES.
    tc = max(_LANE, min(_round_up(SD, _LANE),
                        _round_down(max(_LANE, _TILE_BYTES // (tb * itemsize)), _LANE)))

    x2 = x.reshape(B, SD)
    emb2 = emb_table.reshape(1, PD)  # row-major: first S*D elements == emb[:S]

    grid = (pl.cdiv(SD, tc), pl.cdiv(B, tb))  # emb tile reused across inner batch axis
    xo_spec = pl.BlockSpec((tb, tc), lambda c, b: (b, c))
    cost = pl.CostEstimate(
        flops=B * S * D,
        transcendentals=0,
        bytes_accessed=(2 * B * S * D + S * D) * itemsize,
    )
    out = pl.pallas_call(
        _add_flat_kernel,
        out_shape=jax.ShapeDtypeStruct((B, SD), x.dtype),
        grid_spec=pltpu.PrefetchScalarGridSpec(
            num_scalar_prefetch=0,
            grid=grid,
            in_specs=[
                xo_spec,
                pl.BlockSpec((1, tc), lambda c, b: (0, c)),
            ],
            out_specs=xo_spec,
        ),
        compiler_params=pltpu.CompilerParams(
            dimension_semantics=("parallel", "parallel"),
            vmem_limit_bytes=_VMEM_LIMIT,
        ),
        cost_estimate=cost,
        input_output_aliases={0: 0} if donate_x else {},
    )(x2, emb2)
    return out.reshape(B, S, D)


def positional_encoding(x: jax.Array, emb_table: jax.Array,
                        donate_x: bool = False) -> jax.Array:
    """x: [B, S, D] (or [S, D] for the non-batched module mode);
    emb_table: [num_positions, D] with num_positions >= S."""
    if x.ndim == 2:  # batched=False case of the PyTorch module
        return positional_encoding(x[None], emb_table, donate_x)[0]
    B, S, D = x.shape
    P, D2 = emb_table.shape
    if D2 != D:
        raise ValueError(f"d_model mismatch: x has {D}, table has {D2}")
    if P < S:
        raise ValueError(f"num_positions ({P}) must be >= seq_len ({S})")
    if emb_table.dtype != x.dtype:
        emb_table = emb_table.astype(x.dtype)
    if D % _LANE == 0:
        return _pe_wide(x, emb_table, donate_x)
    return _pe_flat(x, emb_table, donate_x)


if __name__ == "__main__":
    # Module config consistent with the PyTorch defaults (small demo shapes).
    d_model = 32
    num_positions = 20
    batch, seq_len = 2, 8

    key = jax.random.PRNGKey(0)
    k_x, k_emb, k_x2, k_emb2 = jax.random.split(key, 4)

    # nn.Embedding default init is N(0, 1).
    emb_table = jax.random.normal(k_emb, (num_positions, d_model), jnp.float32)
    x = jax.random.normal(k_x, (batch, seq_len, d_model), jnp.float32)

    # Batched path (narrow d_model -> flat lane-dense path).
    out = jax.block_until_ready(positional_encoding(x, emb_table))
    ref = x + emb_table[:seq_len][None, :, :]
    assert out.shape == x.shape
    assert jnp.allclose(out, ref, atol=1e-6), "mismatch vs reference (flat path)"

    # Non-batched path (batched=False of the module).
    out_nb = jax.block_until_ready(positional_encoding(x[0], emb_table))
    assert jnp.allclose(out_nb, x[0] + emb_table[:seq_len], atol=1e-6), \
        "mismatch vs reference (non-batched)"

    # Also exercise the wide-d_model path (d_model % 128 == 0).
    d2, p2, b2, s2 = 128, 32, 2, 16
    emb2 = jax.random.normal(k_emb2, (p2, d2), jnp.float32)
    x2 = jax.random.normal(k_x2, (b2, s2, d2), jnp.float32)
    out2 = jax.block_until_ready(positional_encoding(x2, emb2))
    ref2 = x2 + emb2[:s2][None, :, :]
    assert jnp.allclose(out2, ref2, atol=1e-6), "mismatch vs reference (wide path)"

    print("KERNEL_OK")
</pallas_src>

<mosaic_0001>
module attributes {stable_mosaic.version = 11 : i64} {
  func.func @_add_flat_kernel(%arg0: i32, %arg1: i32, %arg2: memref<2x256xf32, #tpu.memory_space<vmem>>, %arg3: memref<1x256xf32, #tpu.memory_space<vmem>>, %arg4: memref<2x256xf32, #tpu.memory_space<vmem>>) attributes {dimension_semantics = [#tpu.dimension_semantics<parallel>, #tpu.dimension_semantics<parallel>], iteration_bounds = array<i64: 1, 1>, scalar_prefetch = 0 : i64, scratch_operands = 0 : i64, tpu.core_type = #tpu.core_type<tc>, window_params = [{transform_indices = @transform_0, window_bounds = array<i64: 2, 256>}, {transform_indices = @transform_1, window_bounds = array<i64: 1, 256>}, {transform_indices = @transform_2, window_bounds = array<i64: 2, 256>}]} {
    %c0 = arith.constant 0 : index
    %c0_0 = arith.constant 0 : index
    %0 = vector.load %arg2[%c0, %c0_0] : memref<2x256xf32, #tpu.memory_space<vmem>>, vector<2x256xf32>
    %c0_1 = arith.constant 0 : index
    %c0_2 = arith.constant 0 : index
    %1 = vector.load %arg3[%c0_1, %c0_2] : memref<1x256xf32, #tpu.memory_space<vmem>>, vector<1x256xf32>
    %2 = vector.broadcast %1 : vector<1x256xf32> to vector<2x256xf32>
    %3 = arith.addf %0, %2 : vector<2x256xf32>
    %c0_3 = arith.constant 0 : index
    %c0_4 = arith.constant 0 : index
    %4 = vector.load %arg4[%c0_3, %c0_4] : memref<2x256xf32, #tpu.memory_space<vmem>>, vector<2x256xf32>
    tpu.vector_store %arg4[%c0_3, %c0_4], %3 {strides = array<i32>} : memref<2x256xf32, #tpu.memory_space<vmem>>, vector<2x256xf32>,
    return
  }
  func.func @transform_0(%arg0: i32, %arg1: i32) -> (i32, i32) {
    %c0_i32 = arith.constant 0 : i32
    return %arg1, %arg0 : i32, i32
  }
  func.func @transform_1(%arg0: i32, %arg1: i32) -> (i32, i32) {
    %c0_i32 = arith.constant 0 : i32
    %c0_i32_0 = arith.constant 0 : i32
    return %c0_i32, %arg0 : i32, i32
  }
  func.func @transform_2(%arg0: i32, %arg1: i32) -> (i32, i32) {
    %c0_i32 = arith.constant 0 : i32
    return %arg1, %arg0 : i32, i32
  }
}

</mosaic_0001>

<llo_original>
// kernel: tpu_custom_call.1
$region0: #{tpu_custom_call.1}
  #allocation0 [shape = 'u32[]', space=smem, size = 0x4, offset = 0x4, fixed_abs, tag = 'smem constant byte address 0x4 - core index']
  #allocation1 [shape = 'u32[144,128]{1,0:T(1,128)}', space=vmem, size = 0x12000, scoped, tag = 'internal scratch']
  %s0 = inlined_call_operand.hbm [shape: f32[2,256], index: 0, kind: input, shape index: {}]
  %s1 = inlined_call_operand.hbm [shape: f32[1,640], index: 1, kind: input, shape index: {}]
  %s2 = inlined_call_operand.hbm [shape: f32[2,256], index: 2, kind: output, shape index: {}]
  %s3 = sld [smem:[#allocation0]]
  $region26: #{tpu_custom_call.1} parent=0
    _
  %s5 = ssub.s32 1, %s3
  %s6 = scalar_select 0, %s5, %s3
  $region1: #{tpu_custom_call.1} parent=0
    #allocation2 [shape = 'u8[2048]{0}', space=vmem, size = 0x800, scoped, tag = 'input window, operand 0, single buffered']
    #allocation3 [shape = 's32[1]{0}', space=sflag, size = 0x4, scoped, tag = 'scoped memory for tpu_custom_call.1']
    #allocation4 [shape = 's32[1]{0}', space=sflag, size = 0x4, scoped, tag = 'scoped memory for tpu_custom_call.1']
    #allocation5 [shape = 'u8[1024]{0}', space=vmem, size = 0x400, scoped, tag = 'input window, operand 1, single buffered']
    #allocation6 [shape = 's32[1]{0}', space=sflag, size = 0x4, scoped, tag = 'scoped memory for tpu_custom_call.1']
    #allocation7 [shape = 'u8[2048]{0}', space=vmem, size = 0x800, scoped, tag = 'output window, operand 0, single buffered']
    %7 = vsyncpa [#allocation3], 0
    %8 = vsyncpa [#allocation6], 0
    %9 = vsyncpa [#allocation4], 0
    // Predicated region
    $region2: #{tpu_custom_call.1} parent=1 // pred_check
      _
    $region3: #{tpu_custom_call.1} parent=1 // pred_check_branch
      %11 = sbr.rel (0) target = $region5
    $region4: #{tpu_custom_call.1} parent=1 // pred_region
      %s13 = ssub.s32 64, 64
      %14 = vsyncadd [#allocation3], %s13
      %s16 = sshll.u32 [#allocation2], 4
      %s17 = int_to_ptr.vmem [resolvable:$true] %s16
      %19 = dma.hbm_to_vmem [thread:$0]  %s0, 64, %s17, [#allocation3]
    $region5: #{tpu_custom_call.1} parent=1 // pred_fallthru
      _
    // Predicated region
    $region6: #{tpu_custom_call.1} parent=1 // pred_check
      _
    $region7: #{tpu_custom_call.1} parent=1 // pred_check_branch
      %21 = sbr.rel (0) target = $region9
    $region8: #{tpu_custom_call.1} parent=1 // pred_region
      %s23 = ssub.s32 32, 32
      %24 = vsyncadd [#allocation6], %s23
      %s26 = sshll.u32 [#allocation5], 4
      %s27 = int_to_ptr.vmem [resolvable:$true] %s26
      %29 = dma.hbm_to_vmem [thread:$0]  %s1, 32, %s27, [#allocation6]
    $region9: #{tpu_custom_call.1} parent=1 // pred_fallthru
      _
    // Predicated region
    $region10: #{tpu_custom_call.1} parent=1 // pred_check
      _
    $region11: #{tpu_custom_call.1} parent=1 // pred_check_branch
      %31 = sbr.rel (0) target = $region13
    $region12: #{tpu_custom_call.1} parent=1 // pred_region
      %32 = dma.done [#allocation3], 64
    $region13: #{tpu_custom_call.1} parent=1 // pred_fallthru
      _
    // Predicated region
    $region14: #{tpu_custom_call.1} parent=1 // pred_check
      _
    $region15: #{tpu_custom_call.1} parent=1 // pred_check_branch
      %34 = sbr.rel (0) target = $region17
    $region16: #{tpu_custom_call.1} parent=1 // pred_region
      %35 = dma.done [#allocation6], 32
    $region17: #{tpu_custom_call.1} parent=1 // pred_fallthru
      _
    %v36 = vld [vmem:[#allocation2] sm:$0xf]
    %v37 = vld [vmem:[#allocation5] sm:$0x3]
    %v39 = vlaneseq
    %v40 = vshrl.u32 %v39, 7
    %v41 = vsub.s32 0, %v40
    %v42 = vrot.slane %v37, %v41
    %v43 = vlaneseq
    %v44 = vshrl.u32 %v43, 7
    %v45 = vsub.s32 1, %v44
    %v46 = vrot.slane %v37, %v45
    %v47 = vcombine.low %v42, %v46
    %v49 = vunpack.c.l.s4 1983009808
    %v50 = vunpack.c.0.s8 %v49
    %v51 = vlaneseq
    %v52 = vshrl.u32 %v51, 7
    %v53 = vsub.s32 %v50, %v52
    %v54 = vrot.slane %v47, %v53
    %v56 = vadd.f32 %v36, %v54
    %57 = vst [vmem:[#allocation7] sm:$0xf] %v56
    // Predicated region
    $region18: #{tpu_custom_call.1} parent=1 // pred_check
      _
    $region19: #{tpu_custom_call.1} parent=1 // pred_check_branch
      %59 = sbr.rel (0) target = $region21
    $region20: #{tpu_custom_call.1} parent=1 // pred_region
      %s61 = ssub.s32 64, 64
      %62 = vsyncadd [#allocation4], %s61
      %s64 = sshll.u32 [#allocation7], 4
      %s65 = int_to_ptr.vmem [resolvable:$true] %s64
      %67 = dma.vmem_to_hbm [thread:$0]  %s65, 64, %s2, [#allocation4]
    $region21: #{tpu_custom_call.1} parent=1 // pred_fallthru
      _
    // Predicated region
    $region22: #{tpu_custom_call.1} parent=1 // pred_check
      _
    $region23: #{tpu_custom_call.1} parent=1 // pred_check_branch
      %69 = sbr.rel (0) target = $region25
    $region24: #{tpu_custom_call.1} parent=1 // pred_region
      %70 = dma.done [#allocation4], 64
    $region25: #{tpu_custom_call.1} parent=1 // pred_fallthru
      _
    %71 = vsyncpa [#allocation3], 1
    %72 = vsyncpa [#allocation6], 1
    %73 = vsyncpa [#allocation4], 1

</llo_original>
